<compile_context>
chip_gen: v7x
topology: tpu7x:2x2x1
jax: 0.10.0
libtpu: 0.0.40
codegen_flags: <defaults>
</compile_context>

<pallas_src>
import functools

import jax
import jax.numpy as jnp
from jax.experimental import pallas as pl
from jax.experimental.pallas import tpu as pltpu


def _round_up(x, m):
    return (x + m - 1) // m * m


def _projector_kernel(x_ref, w1_ref, b1_ref,
                      wr1_ref, br1_ref,
                      wr2_ref, br2_ref,
                      w2_ref, b2_ref,
                      o_ref, *, seq_len, seq_pad):
    # x_ref block: (tb * seq_pad, ndim_pad) f32 -- batch tile fused into M.
    m = x_ref.shape[0]
    tb = m // seq_pad
    hidden = w1_ref.shape[1]

    # In-kernel cast to bf16: rides the VPU slot under MXU work (free), and the
    # kernel reads 4 B/elem of x from HBM instead of a wrapper-side cast pass.
    x = x_ref[...].astype(jnp.bfloat16)                              # (M, ndim_pad)

    # Linear(ndim -> hidden): bf16 MXU operands, f32 accumulation.
    h = jnp.dot(x, w1_ref[...],
                preferred_element_type=jnp.float32) + b1_ref[...]    # f32 (M, hidden)

    # ResidualLayer #1:  h = h + relu(Linear(h))
    r1 = jnp.dot(h.astype(jnp.bfloat16), wr1_ref[...],
                 preferred_element_type=jnp.float32) + br1_ref[...]
    h = h + jnp.maximum(r1, 0.0)

    # ResidualLayer #2
    r2 = jnp.dot(h.astype(jnp.bfloat16), wr2_ref[...],
                 preferred_element_type=jnp.float32) + br2_ref[...]
    h = h + jnp.maximum(r2, 0.0)

    # Hoist the sequence-sum above the final Linear (sum commutes with affine;
    # bias scaled by the REAL S): shrinks the last matmul by a factor of S.
    hr = h.reshape(tb, seq_pad, hidden)
    if seq_pad != seq_len:
        # Zero the padded sequence rows (they picked up biases / relus).
        sidx = jax.lax.broadcasted_iota(jnp.int32, (tb, seq_pad, hidden), 1)
        hr = jnp.where(sidx < seq_len, hr, 0.0)
    h_sum = jnp.sum(hr, axis=1)                                      # f32 (tb, hidden)

    y = jnp.dot(h_sum.astype(jnp.bfloat16), w2_ref[...],
                preferred_element_type=jnp.float32) + jnp.float32(seq_len) * b2_ref[...]

    o_ref[...] = y                                                   # f32 (tb, out_pad)


def prepare_params(params, *, ndim, outdim):
    """One-time parameter prep (call once, reuse across forward calls):
    pad to lane-dense shapes and cast MXU operands to bf16."""
    (w1, b1, wr1, br1, wr2, br2, w2, b2) = params
    hidden = w1.shape[1]
    ndim_pad = _round_up(ndim, 128)
    out_pad = _round_up(outdim, 128)

    w1p = jnp.pad(w1, ((0, ndim_pad - ndim), (0, 0)))       # zero K rows: no-op
    w2p = jnp.pad(w2, ((0, 0), (0, out_pad - outdim)))      # zero out columns
    b2p = jnp.pad(b2, ((0, 0), (0, out_pad - outdim)))

    return dict(
        w1=w1p.astype(jnp.bfloat16), b1=b1.astype(jnp.float32),
        wr1=wr1.astype(jnp.bfloat16), br1=br1.astype(jnp.float32),
        wr2=wr2.astype(jnp.bfloat16), br2=br2.astype(jnp.float32),
        w2=w2p.astype(jnp.bfloat16), b2=b2p.astype(jnp.float32),
        ndim=ndim, outdim=outdim, hidden=hidden,
        ndim_pad=ndim_pad, out_pad=out_pad,
    )


def _vmem_budget_bytes():
    # Per-chip scoped-VMEM budget: ~75% of physical, capped at 100 MiB.
    # v5e/v6e (128 MiB) -> 96 MiB; v7x (64 MiB) -> 48 MiB.
    try:
        phys = pltpu.get_tpu_info().vmem_capacity_bytes
    except Exception:
        phys = 64 << 20                       # conservative fallback (v7x-sized)
    return int(min(100 << 20, phys * 3 // 4))


def word_to_image_projector(x, prep, *, target_rows=512):
    """x: [B, 1, S, ndim] float32, prep: output of prepare_params -> [B, outdim] f32."""
    B, one, S, ndim = x.shape
    assert one == 1 and ndim == prep["ndim"]
    hidden = prep["hidden"]
    ndim_pad = prep["ndim_pad"]
    out_pad = prep["out_pad"]
    outdim = prep["outdim"]

    S_pad = _round_up(S, 8)   # keeps the in-kernel (M,h)->(tb,S,h) reshape tile-aligned

    # ---- VMEM budget -> batch tile selection -------------------------------
    budget = _vmem_budget_bytes()

    # bf16 weights (default double-buffered constant-index blocks) + f32 biases.
    weight_bytes = 2 * 2 * (ndim_pad * hidden + 2 * hidden * hidden + hidden * out_pad)
    bias_bytes = 2 * 4 * (3 * hidden + out_pad)
    fixed = weight_bytes + bias_bytes + (2 << 20)          # + slack for compiler temps

    # Per batch row of the tile:
    #   f32 x block (double buffered) + ~10 B/elem live intermediates (h f32,
    #   r f32, bf16 cast of h) + f32 out block (double buffered).
    per_batch = S_pad * (2 * 4 * ndim_pad + 10 * hidden) + 2 * 4 * out_pad
    avail = max(budget - fixed, 4 << 20)
    tb_vmem = max(8, int(avail // per_batch) // 8 * 8)

    # MXU-row target: M = tb * S_pad ~ target_rows (multiple of 8).
    tb_target = max(8, _round_up(pl.cdiv(target_rows, S_pad), 8))
    tb = min(tb_target, tb_vmem)

    B_pad8 = _round_up(B, 8)
    if B_pad8 >= 16:
        # Leave >=2 grid steps so the "parallel" axis can shard across 2 TCs (v7x).
        tb = min(tb, max(8, (B_pad8 // 2) // 8 * 8))
    tb = min(tb, B_pad8)

    B_pad = _round_up(B, tb)
    M = tb * S_pad
    grid = (B_pad // tb,)

    vmem_limit = int(min(budget, fixed + tb * per_batch + (8 << 20)))

    # ---- wrapper-side layout plumbing (f32 only; no cast pass over x) ------
    x3 = x.reshape(B, S, ndim)
    pad_b, pad_s, pad_d = B_pad - B, S_pad - S, ndim_pad - ndim
    if pad_b or pad_s or pad_d:
        x3 = jnp.pad(x3, ((0, pad_b), (0, pad_s), (0, pad_d)))
    x2 = x3.reshape(B_pad * S_pad, ndim_pad)               # fused M dimension, f32

    flops = (2 * B_pad * S_pad * (ndim_pad * hidden + 2 * hidden * hidden)
             + 2 * B_pad * hidden * out_pad)
    bytes_accessed = (x2.size * 4
                      + (prep["w1"].size + prep["wr1"].size
                         + prep["wr2"].size + prep["w2"].size) * 2
                      + (prep["b1"].size + prep["br1"].size
                         + prep["br2"].size + prep["b2"].size) * 4
                      + B_pad * out_pad * 4)
    cost = pl.CostEstimate(flops=flops, transcendentals=0,
                           bytes_accessed=bytes_accessed)

    kernel = functools.partial(_projector_kernel, seq_len=S, seq_pad=S_pad)

    def const_spec(arr):
        nd = arr.ndim
        # Constant block index: the pipeline re-uses the resident copy across steps.
        return pl.BlockSpec(arr.shape, lambda b, _n=nd: (0,) * _n)

    out = pl.pallas_call(
        kernel,
        out_shape=jax.ShapeDtypeStruct((B_pad, out_pad), jnp.float32),
        grid_spec=pltpu.PrefetchScalarGridSpec(
            num_scalar_prefetch=0,
            grid=grid,
            in_specs=[
                pl.BlockSpec((M, ndim_pad), lambda b: (b, 0)),   # x, batch-tiled
                const_spec(prep["w1"]), const_spec(prep["b1"]),
                const_spec(prep["wr1"]), const_spec(prep["br1"]),
                const_spec(prep["wr2"]), const_spec(prep["br2"]),
                const_spec(prep["w2"]), const_spec(prep["b2"]),
            ],
            out_specs=pl.BlockSpec((tb, out_pad), lambda b: (b, 0)),
        ),
        compiler_params=pltpu.CompilerParams(
            dimension_semantics=("parallel",),
            vmem_limit_bytes=vmem_limit),
        cost_estimate=cost,
    )(x2, prep["w1"], prep["b1"], prep["wr1"], prep["br1"],
      prep["wr2"], prep["br2"], prep["w2"], prep["b2"])

    return out[:B, :outdim]


def make_params(key, ndim, outdim):
    """Deterministic synthetic parameters. Weights stored as [in, out] (already
    transposed relative to PyTorch's [out, in]); biases as [1, out]."""
    hidden = 4 * ndim
    ks = jax.random.split(key, 8)
    scale = 0.05
    w1 = scale * jax.random.normal(ks[0], (ndim, hidden), jnp.float32)
    b1 = scale * jax.random.normal(ks[1], (1, hidden), jnp.float32)
    wr1 = scale * jax.random.normal(ks[2], (hidden, hidden), jnp.float32)
    br1 = scale * jax.random.normal(ks[3], (1, hidden), jnp.float32)
    wr2 = scale * jax.random.normal(ks[4], (hidden, hidden), jnp.float32)
    br2 = scale * jax.random.normal(ks[5], (1, hidden), jnp.float32)
    w2 = scale * jax.random.normal(ks[6], (hidden, outdim), jnp.float32)
    b2 = scale * jax.random.normal(ks[7], (1, outdim), jnp.float32)
    return (w1, b1, wr1, br1, wr2, br2, w2, b2)


def _reference(x, params):
    (w1, b1, wr1, br1, wr2, br2, w2, b2) = params
    h = x @ w1 + b1
    h = h + jax.nn.relu(h @ wr1 + br1)
    h = h + jax.nn.relu(h @ wr2 + br2)
    y = h @ w2 + b2
    return jnp.squeeze(jnp.sum(y, axis=-2), axis=1)


if __name__ == "__main__":
    key = jax.random.PRNGKey(0)
    ndim, outdim = 32, 32
    B, S = 2, 8

    kx, kp = jax.random.split(key)
    x = jax.random.normal(kx, (B, 1, S, ndim), jnp.float32)
    params = make_params(kp, ndim, outdim)

    prep = prepare_params(params, ndim=ndim, outdim=outdim)   # one-time weight prep
    out = word_to_image_projector(x, prep)
    out = jax.block_until_ready(out)

    ref = _reference(x, params)
    assert out.shape == (B, outdim), out.shape
    # bf16 MXU operands with f32 accumulation -> compare against the f32
    # reference with a tolerance that covers bf16 input rounding.
    assert jnp.allclose(out, ref, atol=3e-2, rtol=3e-2), "mismatch vs reference"

    print("KERNEL_OK")
</pallas_src>

<mosaic_0001>
module attributes {stable_mosaic.version = 11 : i64} {
  func.func @_projector_kernel(%arg0: i32, %arg1: memref<64x128xf32, #tpu.memory_space<vmem>>, %arg2: memref<128x128xbf16, #tpu.memory_space<vmem>>, %arg3: memref<1x128xf32, #tpu.memory_space<vmem>>, %arg4: memref<128x128xbf16, #tpu.memory_space<vmem>>, %arg5: memref<1x128xf32, #tpu.memory_space<vmem>>, %arg6: memref<128x128xbf16, #tpu.memory_space<vmem>>, %arg7: memref<1x128xf32, #tpu.memory_space<vmem>>, %arg8: memref<128x128xbf16, #tpu.memory_space<vmem>>, %arg9: memref<1x128xf32, #tpu.memory_space<vmem>>, %arg10: memref<8x128xf32, #tpu.memory_space<vmem>>) attributes {dimension_semantics = [#tpu.dimension_semantics<parallel>], iteration_bounds = array<i64: 1>, scalar_prefetch = 0 : i64, scratch_operands = 0 : i64, tpu.core_type = #tpu.core_type<tc>, window_params = [{transform_indices = @transform_0, window_bounds = array<i64: 64, 128>}, {pipeline_mode = #tpu.pipeline_mode<synchronous>, transform_indices = @transform_1, window_bounds = array<i64: 128, 128>}, {pipeline_mode = #tpu.pipeline_mode<synchronous>, transform_indices = @transform_2, window_bounds = array<i64: 1, 128>}, {pipeline_mode = #tpu.pipeline_mode<synchronous>, transform_indices = @transform_3, window_bounds = array<i64: 128, 128>}, {pipeline_mode = #tpu.pipeline_mode<synchronous>, transform_indices = @transform_4, window_bounds = array<i64: 1, 128>}, {pipeline_mode = #tpu.pipeline_mode<synchronous>, transform_indices = @transform_5, window_bounds = array<i64: 128, 128>}, {pipeline_mode = #tpu.pipeline_mode<synchronous>, transform_indices = @transform_6, window_bounds = array<i64: 1, 128>}, {pipeline_mode = #tpu.pipeline_mode<synchronous>, transform_indices = @transform_7, window_bounds = array<i64: 128, 128>}, {pipeline_mode = #tpu.pipeline_mode<synchronous>, transform_indices = @transform_8, window_bounds = array<i64: 1, 128>}, {transform_indices = @transform_9, window_bounds = array<i64: 8, 128>}]} {
    %c0 = arith.constant 0 : index
    %c0_0 = arith.constant 0 : index
    %0 = vector.load %arg1[%c0, %c0_0] : memref<64x128xf32, #tpu.memory_space<vmem>>, vector<64x128xf32>
    %1 = arith.truncf %0 : vector<64x128xf32> to vector<64x128xbf16>
    %c0_1 = arith.constant 0 : index
    %c0_2 = arith.constant 0 : index
    %2 = vector.load %arg2[%c0_1, %c0_2] : memref<128x128xbf16, #tpu.memory_space<vmem>>, vector<128x128xbf16>
    %cst = arith.constant dense<0.000000e+00> : vector<64x128xf32>
    %3 = tpu.matmul %1, %2, %cst {dimension_numbers = #tpu.dot_dimension_numbers<[1], [0], [0], [1], [0, 0, 1, 1], [], []>} : vector<64x128xbf16>, vector<128x128xbf16>, vector<64x128xf32> -> vector<64x128xf32>
    %c0_3 = arith.constant 0 : index
    %c0_4 = arith.constant 0 : index
    %4 = vector.load %arg3[%c0_3, %c0_4] : memref<1x128xf32, #tpu.memory_space<vmem>>, vector<1x128xf32>
    %5 = vector.broadcast %4 : vector<1x128xf32> to vector<64x128xf32>
    %6 = arith.addf %3, %5 : vector<64x128xf32>
    %7 = arith.truncf %6 : vector<64x128xf32> to vector<64x128xbf16>
    %c0_5 = arith.constant 0 : index
    %c0_6 = arith.constant 0 : index
    %8 = vector.load %arg4[%c0_5, %c0_6] : memref<128x128xbf16, #tpu.memory_space<vmem>>, vector<128x128xbf16>
    %cst_7 = arith.constant dense<0.000000e+00> : vector<64x128xf32>
    %9 = tpu.matmul %7, %8, %cst_7 {dimension_numbers = #tpu.dot_dimension_numbers<[1], [0], [0], [1], [0, 0, 1, 1], [], []>} : vector<64x128xbf16>, vector<128x128xbf16>, vector<64x128xf32> -> vector<64x128xf32>
    %c0_8 = arith.constant 0 : index
    %c0_9 = arith.constant 0 : index
    %10 = vector.load %arg5[%c0_8, %c0_9] : memref<1x128xf32, #tpu.memory_space<vmem>>, vector<1x128xf32>
    %11 = vector.broadcast %10 : vector<1x128xf32> to vector<64x128xf32>
    %12 = arith.addf %9, %11 : vector<64x128xf32>
    %cst_10 = arith.constant 0.000000e+00 : f32
    %13 = vector.broadcast %cst_10 : f32 to vector<64x128xf32>
    %14 = arith.maximumf %12, %13 : vector<64x128xf32>
    %15 = arith.addf %6, %14 : vector<64x128xf32>
    %16 = arith.truncf %15 : vector<64x128xf32> to vector<64x128xbf16>
    %c0_11 = arith.constant 0 : index
    %c0_12 = arith.constant 0 : index
    %17 = vector.load %arg6[%c0_11, %c0_12] : memref<128x128xbf16, #tpu.memory_space<vmem>>, vector<128x128xbf16>
    %cst_13 = arith.constant dense<0.000000e+00> : vector<64x128xf32>
    %18 = tpu.matmul %16, %17, %cst_13 {dimension_numbers = #tpu.dot_dimension_numbers<[1], [0], [0], [1], [0, 0, 1, 1], [], []>} : vector<64x128xbf16>, vector<128x128xbf16>, vector<64x128xf32> -> vector<64x128xf32>
    %c0_14 = arith.constant 0 : index
    %c0_15 = arith.constant 0 : index
    %19 = vector.load %arg7[%c0_14, %c0_15] : memref<1x128xf32, #tpu.memory_space<vmem>>, vector<1x128xf32>
    %20 = vector.broadcast %19 : vector<1x128xf32> to vector<64x128xf32>
    %21 = arith.addf %18, %20 : vector<64x128xf32>
    %cst_16 = arith.constant 0.000000e+00 : f32
    %22 = vector.broadcast %cst_16 : f32 to vector<64x128xf32>
    %23 = arith.maximumf %21, %22 : vector<64x128xf32>
    %24 = arith.addf %15, %23 : vector<64x128xf32>
    %25 = vector.shape_cast %24 : vector<64x128xf32> to vector<8x8x128xf32>
    %cst_17 = arith.constant dense<0.000000e+00> : vector<8x128xf32>
    %26 = vector.multi_reduction <add>, %25, %cst_17 [1] : vector<8x8x128xf32> to vector<8x128xf32>
    %27 = arith.truncf %26 : vector<8x128xf32> to vector<8x128xbf16>
    %c0_18 = arith.constant 0 : index
    %c0_19 = arith.constant 0 : index
    %28 = vector.load %arg8[%c0_18, %c0_19] : memref<128x128xbf16, #tpu.memory_space<vmem>>, vector<128x128xbf16>
    %cst_20 = arith.constant dense<0.000000e+00> : vector<8x128xf32>
    %29 = tpu.matmul %27, %28, %cst_20 {dimension_numbers = #tpu.dot_dimension_numbers<[1], [0], [0], [1], [0, 0, 1, 1], [], []>} : vector<8x128xbf16>, vector<128x128xbf16>, vector<8x128xf32> -> vector<8x128xf32>
    %c0_21 = arith.constant 0 : index
    %c0_22 = arith.constant 0 : index
    %30 = vector.load %arg9[%c0_21, %c0_22] : memref<1x128xf32, #tpu.memory_space<vmem>>, vector<1x128xf32>
    %cst_23 = arith.constant 8.000000e+00 : f32
    %31 = vector.broadcast %cst_23 : f32 to vector<1x128xf32>
    %32 = arith.mulf %31, %30 : vector<1x128xf32>
    %33 = vector.broadcast %32 : vector<1x128xf32> to vector<8x128xf32>
    %34 = arith.addf %29, %33 : vector<8x128xf32>
    %c0_24 = arith.constant 0 : index
    %c0_25 = arith.constant 0 : index
    %35 = vector.load %arg10[%c0_24, %c0_25] : memref<8x128xf32, #tpu.memory_space<vmem>>, vector<8x128xf32>
    tpu.vector_store %arg10[%c0_24, %c0_25], %34 {strides = array<i32>} : memref<8x128xf32, #tpu.memory_space<vmem>>, vector<8x128xf32>,
    return
  }
  func.func @transform_0(%arg0: i32) -> (i32, i32) {
    %c0_i32 = arith.constant 0 : i32
    %c0_i32_0 = arith.constant 0 : i32
    return %arg0, %c0_i32 : i32, i32
  }
  func.func @transform_1(%arg0: i32) -> (i32, i32) {
    %c0_i32 = arith.constant 0 : i32
    %c0_i32_0 = arith.constant 0 : i32
    %c0_i32_1 = arith.constant 0 : i32
    return %c0_i32, %c0_i32_0 : i32, i32
  }
  func.func @transform_2(%arg0: i32) -> (i32, i32) {
    %c0_i32 = arith.constant 0 : i32
    %c0_i32_0 = arith.constant 0 : i32
    %c0_i32_1 = arith.constant 0 : i32
    return %c0_i32, %c0_i32_0 : i32, i32
  }
  func.func @transform_3(%arg0: i32) -> (i32, i32) {
    %c0_i32 = arith.constant 0 : i32
    %c0_i32_0 = arith.constant 0 : i32
    %c0_i32_1 = arith.constant 0 : i32
    return %c0_i32, %c0_i32_0 : i32, i32
  }
  func.func @transform_4(%arg0: i32) -> (i32, i32) {
    %c0_i32 = arith.constant 0 : i32
    %c0_i32_0 = arith.constant 0 : i32
    %c0_i32_1 = arith.constant 0 : i32
    return %c0_i32, %c0_i32_0 : i32, i32
  }
  func.func @transform_5(%arg0: i32) -> (i32, i32) {
    %c0_i32 = arith.constant 0 : i32
    %c0_i32_0 = arith.constant 0 : i32
    %c0_i32_1 = arith.constant 0 : i32
    return %c0_i32, %c0_i32_0 : i32, i32
  }
  func.func @transform_6(%arg0: i32) -> (i32, i32) {
    %c0_i32 = arith.constant 0 : i32
    %c0_i32_0 = arith.constant 0 : i32
    %c0_i32_1 = arith.constant 0 : i32
    return %c0_i32, %c0_i32_0 : i32, i32
  }
  func.func @transform_7(%arg0: i32) -> (i32, i32) {
    %c0_i32 = arith.constant 0 : i32
    %c0_i32_0 = arith.constant 0 : i32
    %c0_i32_1 = arith.constant 0 : i32
    return %c0_i32, %c0_i32_0 : i32, i32
  }
  func.func @transform_8(%arg0: i32) -> (i32, i32) {
    %c0_i32 = arith.constant 0 : i32
    %c0_i32_0 = arith.constant 0 : i32
    %c0_i32_1 = arith.constant 0 : i32
    return %c0_i32, %c0_i32_0 : i32, i32
  }
  func.func @transform_9(%arg0: i32) -> (i32, i32) {
    %c0_i32 = arith.constant 0 : i32
    %c0_i32_0 = arith.constant 0 : i32
    return %arg0, %c0_i32 : i32, i32
  }
}

</mosaic_0001>

<llo_original>
// kernel: tpu_custom_call.1
$region0: #{tpu_custom_call.1}
  #allocation0 [shape = 'u32[]', space=smem, size = 0x4, offset = 0x4, fixed_abs, tag = 'smem constant byte address 0x4 - core index']
  #allocation1 [shape = 'u32[144,128]{1,0:T(1,128)}', space=vmem, size = 0x12000, scoped, tag = 'internal scratch']
  %s0 = inlined_call_operand.hbm [shape: f32[64,128], index: 0, kind: input, shape index: {}]
  %s1 = inlined_call_operand.hbm [shape: bf16[128,128], index: 1, kind: input, shape index: {}]
  %s2 = inlined_call_operand.vmem [shape: f32[1,128], index: 2, kind: input, shape index: {}]
  %s3 = inlined_call_operand.hbm [shape: bf16[128,128], index: 3, kind: input, shape index: {}]
  %s4 = inlined_call_operand.vmem [shape: f32[1,128], index: 4, kind: input, shape index: {}]
  %s5 = inlined_call_operand.hbm [shape: bf16[128,128], index: 5, kind: input, shape index: {}]
  %s6 = inlined_call_operand.vmem [shape: f32[1,128], index: 6, kind: input, shape index: {}]
  %s7 = inlined_call_operand.hbm [shape: bf16[128,128], index: 7, kind: input, shape index: {}]
  %s8 = inlined_call_operand.vmem [shape: f32[1,128], index: 8, kind: input, shape index: {}]
  %s9 = inlined_call_operand.hbm [shape: f32[8,128], index: 9, kind: output, shape index: {}]
  %s10 = sld [smem:[#allocation0]]
  $region66: #{tpu_custom_call.1} parent=0
    _
  %s12 = ssub.s32 1, %s10
  %s13 = scalar_select 0, %s12, %s10
  $region1: #{tpu_custom_call.1} parent=0
    #allocation2 [shape = 'u8[32768]{0}', space=vmem, size = 0x8000, scoped, tag = 'input window, operand 0, single buffered']
    #allocation3 [shape = 's32[1]{0}', space=sflag, size = 0x4, scoped, tag = 'scoped memory for tpu_custom_call.1']
    #allocation4 [shape = 's32[1]{0}', space=sflag, size = 0x4, scoped, tag = 'scoped memory for tpu_custom_call.1']
    #allocation5 [shape = 'u8[32768]{0}', space=vmem, size = 0x8000, scoped, tag = 'input window, operand 1, single buffered']
    #allocation6 [shape = 's32[1]{0}', space=sflag, size = 0x4, scoped, tag = 'scoped memory for tpu_custom_call.1']
    #allocation7 [shape = 'u8[32768]{0}', space=vmem, size = 0x8000, scoped, tag = 'input window, operand 3, single buffered']
    #allocation8 [shape = 'u8[32768]{0}', space=vmem, size = 0x8000, scoped, tag = 'input window, operand 5, single buffered']
    #allocation9 [shape = 's32[1]{0}', space=sflag, size = 0x4, scoped, tag = 'scoped memory for tpu_custom_call.1']
    #allocation10 [shape = 'u8[32768]{0}', space=vmem, size = 0x8000, scoped, tag = 'input window, operand 7, single buffered']
    #allocation11 [shape = 'u8[4096]{0}', space=vmem, size = 0x1000, scoped, tag = 'output window, operand 0, single buffered']
    %14 = vsyncpa [#allocation3], 0
    %15 = vsyncpa [#allocation6], 0
    %16 = vsyncpa [#allocation9], 0
    %17 = vsyncpa [#allocation4], 0
    // Predicated region
    $region2: #{tpu_custom_call.1} parent=1 // pred_check
      _
    $region3: #{tpu_custom_call.1} parent=1 // pred_check_branch
      %19 = sbr.rel (0) target = $region5
    $region4: #{tpu_custom_call.1} parent=1 // pred_region
      %s21 = ssub.s32 1024, 1024
      %22 = vsyncadd [#allocation3], %s21
      %s23 = sshll.u32 [#allocation2], 4
      %s24 = int_to_ptr.vmem [resolvable:$true] %s23
      %29 = dma.hbm_to_vmem [thread:$0]  %s0, 1024, %s24, [#allocation3], 128, 128, 8
    $region5: #{tpu_custom_call.1} parent=1 // pred_fallthru
      _
    // Predicated region
    $region6: #{tpu_custom_call.1} parent=1 // pred_check
      _
    $region7: #{tpu_custom_call.1} parent=1 // pred_check_branch
      %31 = sbr.rel (0) target = $region9
    $region8: #{tpu_custom_call.1} parent=1 // pred_region
      %s33 = ssub.s32 1024, 1024
      %34 = vsyncadd [#allocation6], %s33
      %s35 = sshll.u32 [#allocation5], 4
      %s36 = int_to_ptr.vmem [resolvable:$true] %s35
      %41 = dma.hbm_to_vmem [thread:$0]  %s1, 1024, %s36, [#allocation6], 64, 64, 4
    $region9: #{tpu_custom_call.1} parent=1 // pred_fallthru
      _
    // Predicated region
    $region10: #{tpu_custom_call.1} parent=1 // pred_check
      _
    $region11: #{tpu_custom_call.1} parent=1 // pred_check_branch
      %43 = sbr.rel (0) target = $region13
    $region12: #{tpu_custom_call.1} parent=1 // pred_region
      _
    $region13: #{tpu_custom_call.1} parent=1 // pred_fallthru
      _
    // Predicated region
    $region14: #{tpu_custom_call.1} parent=1 // pred_check
      _
    $region15: #{tpu_custom_call.1} parent=1 // pred_check_branch
      %45 = sbr.rel (0) target = $region17
    $region16: #{tpu_custom_call.1} parent=1 // pred_region
      %s47 = ssub.s32 1024, 1024
      %48 = vsyncadd [#allocation6], %s47
      %s49 = sshll.u32 [#allocation7], 4
      %s50 = int_to_ptr.vmem [resolvable:$true] %s49
      %55 = dma.hbm_to_vmem [thread:$0]  %s3, 1024, %s50, [#allocation6], 64, 64, 4
    $region17: #{tpu_custom_call.1} parent=1 // pred_fallthru
      _
    // Predicated region
    $region18: #{tpu_custom_call.1} parent=1 // pred_check
      _
    $region19: #{tpu_custom_call.1} parent=1 // pred_check_branch
      %57 = sbr.rel (0) target = $region21
    $region20: #{tpu_custom_call.1} parent=1 // pred_region
      _
    $region21: #{tpu_custom_call.1} parent=1 // pred_fallthru
      _
    // Predicated region
    $region22: #{tpu_custom_call.1} parent=1 // pred_check
      _
    $region23: #{tpu_custom_call.1} parent=1 // pred_check_branch
      %59 = sbr.rel (0) target = $region25
    $region24: #{tpu_custom_call.1} parent=1 // pred_region
      %s61 = ssub.s32 1024, 1024
      %62 = vsyncadd [#allocation9], %s61
      %s63 = sshll.u32 [#allocation8], 4
      %s64 = int_to_ptr.vmem [resolvable:$true] %s63
      %69 = dma.hbm_to_vmem [thread:$0]  %s5, 1024, %s64, [#allocation9], 64, 64, 4
    $region25: #{tpu_custom_call.1} parent=1 // pred_fallthru
      _
    // Predicated region
    $region26: #{tpu_custom_call.1} parent=1 // pred_check
      _
    $region27: #{tpu_custom_call.1} parent=1 // pred_check_branch
      %71 = sbr.rel (0) target = $region29
    $region28: #{tpu_custom_call.1} parent=1 // pred_region
      _
    $region29: #{tpu_custom_call.1} parent=1 // pred_fallthru
      _
    // Predicated region
    $region30: #{tpu_custom_call.1} parent=1 // pred_check
      _
    $region31: #{tpu_custom_call.1} parent=1 // pred_check_branch
      %73 = sbr.rel (0) target = $region33
    $region32: #{tpu_custom_call.1} parent=1 // pred_region
      %s75 = ssub.s32 1024, 1024
      %76 = vsyncadd [#allocation9], %s75
      %s77 = sshll.u32 [#allocation10], 4
      %s78 = int_to_ptr.vmem [resolvable:$true] %s77
      %83 = dma.hbm_to_vmem [thread:$0]  %s7, 1024, %s78, [#allocation9], 64, 64, 4
    $region33: #{tpu_custom_call.1} parent=1 // pred_fallthru
      _
    // Predicated region
    $region34: #{tpu_custom_call.1} parent=1 // pred_check
      _
    $region35: #{tpu_custom_call.1} parent=1 // pred_check_branch
      %85 = sbr.rel (0) target = $region37
    $region36: #{tpu_custom_call.1} parent=1 // pred_region
      _
    $region37: #{tpu_custom_call.1} parent=1 // pred_fallthru
      _
    // Predicated region
    $region38: #{tpu_custom_call.1} parent=1 // pred_check
      _
    $region39: #{tpu_custom_call.1} parent=1 // pred_check_branch
      %87 = sbr.rel (0) target = $region41
    $region40: #{tpu_custom_call.1} parent=1 // pred_region
      %88 = dma.done [#allocation3], 1024
    $region41: #{tpu_custom_call.1} parent=1 // pred_fallthru
      _
    // Predicated region
    $region42: #{tpu_custom_call.1} parent=1 // pred_check
      _
    $region43: #{tpu_custom_call.1} parent=1 // pred_check_branch
      %90 = sbr.rel (0) target = $region45
    $region44: #{tpu_custom_call.1} parent=1 // pred_region
      %91 = dma.done [#allocation6], 1024
    $region45: #{tpu_custom_call.1} parent=1 // pred_fallthru
      _
    // Predicated region
    $region46: #{tpu_custom_call.1} parent=1 // pred_check
      _
    $region47: #{tpu_custom_call.1} parent=1 // pred_check_branch
      %93 = sbr.rel (0) target = $region49
    $region48: #{tpu_custom_call.1} parent=1 // pred_region
      %94 = dma.done [#allocation6], 1024
    $region49: #{tpu_custom_call.1} parent=1 // pred_fallthru
      _
    // Predicated region
    $region50: #{tpu_custom_call.1} parent=1 // pred_check
      _
    $region51: #{tpu_custom_call.1} parent=1 // pred_check_branch
      %96 = sbr.rel (0) target = $region53
    $region52: #{tpu_custom_call.1} parent=1 // pred_region
      %97 = dma.done [#allocation9], 1024
    $region53: #{tpu_custom_call.1} parent=1 // pred_fallthru
      _
    // Predicated region
    $region54: #{tpu_custom_call.1} parent=1 // pred_check
      _
    $region55: #{tpu_custom_call.1} parent=1 // pred_check_branch
      %99 = sbr.rel (0) target = $region57
    $region56: #{tpu_custom_call.1} parent=1 // pred_region
      %100 = dma.done [#allocation9], 1024
    $region57: #{tpu_custom_call.1} parent=1 // pred_fallthru
      _
    %v102 = vld [vmem:[#allocation2] sm:$0xff]
    %v103 = vld [vmem:[#allocation2 + $0x8] sm:$0xff]
    %v104 = vld [vmem:[#allocation2 + $0x10] sm:$0xff]
    %v105 = vld [vmem:[#allocation2 + $0x18] sm:$0xff]
    %v106 = vld [vmem:[#allocation2 + $0x20] sm:$0xff]
    %v107 = vld [vmem:[#allocation2 + $0x28] sm:$0xff]
    %v108 = vld [vmem:[#allocation2 + $0x30] sm:$0xff]
    %v109 = vld [vmem:[#allocation2 + $0x38] sm:$0xff]
    %v110 = vpack.c.bf16 %v103, %v102
    %v111 = vpack.c.bf16 %v105, %v104
    %v112 = vpack.c.bf16 %v107, %v106
    %v113 = vpack.c.bf16 %v109, %v108
    %v114 = vld [vmem:[#allocation5] sm:$0xf]
    %v115 = vld [vmem:[#allocation5 + $0x4] sm:$0xf]
    %v116 = vld [vmem:[#allocation5 + $0x8] sm:$0xf]
    %v117 = vld [vmem:[#allocation5 + $0xc] sm:$0xf]
    %v118 = vld [vmem:[#allocation5 + $0x10] sm:$0xf]
    %v119 = vld [vmem:[#allocation5 + $0x14] sm:$0xf]
    %v120 = vld [vmem:[#allocation5 + $0x18] sm:$0xf]
    %v121 = vld [vmem:[#allocation5 + $0x1c] sm:$0xf]
    %v122 = vld [vmem:[#allocation5 + $0x20] sm:$0xf]
    %v123 = vld [vmem:[#allocation5 + $0x24] sm:$0xf]
    %v124 = vld [vmem:[#allocation5 + $0x28] sm:$0xf]
    %v125 = vld [vmem:[#allocation5 + $0x2c] sm:$0xf]
    %v126 = vld [vmem:[#allocation5 + $0x30] sm:$0xf]
    %v127 = vld [vmem:[#allocation5 + $0x34] sm:$0xf]
    %v128 = vld [vmem:[#allocation5 + $0x38] sm:$0xf]
    %v129 = vld [vmem:[#allocation5 + $0x3c] sm:$0xf]
    %v130 = vld [vmem:[%s2] sm:$0x1]
    %v132 = vlaneseq
    %v133 = vshrl.u32 %v132, 7
    %v134 = vsub.s32 0, %v133
    %v135 = vrot.slane %v130, %v134
    %v153 = vunpack.c.l.b16 %v114
    %v154 = vunpack.c.l.b16 %v115
    %v155 = vunpack.c.l.b16 %v116
    %v156 = vunpack.c.l.b16 %v117
    %v157 = vunpack.c.l.b16 %v118
    %v158 = vunpack.c.l.b16 %v119
    %v159 = vunpack.c.l.b16 %v120
    %v160 = vunpack.c.l.b16 %v121
    %v161 = vunpack.c.l.b16 %v122
    %v162 = vunpack.c.l.b16 %v123
    %v163 = vunpack.c.l.b16 %v124
    %v164 = vunpack.c.l.b16 %v125
    %v165 = vunpack.c.l.b16 %v126
    %v166 = vunpack.c.l.b16 %v127
    %v167 = vunpack.c.l.b16 %v128
    %v168 = vunpack.c.l.b16 %v129
    %v169 = vpack.c.b16 %v154, %v153
    %v170 = vpack.c.b16 %v156, %v155
    %v171 = vpack.c.b16 %v158, %v157
    %v172 = vpack.c.b16 %v160, %v159
    %v173 = vpack.c.b16 %v162, %v161
    %v174 = vpack.c.b16 %v164, %v163
    %v175 = vpack.c.b16 %v166, %v165
    %v176 = vpack.c.b16 %v168, %v167
    %185 = vmatprep.subr.bf16.mxu0 0
    %186 = vmatpush1.bf16.msra.mxu0 %v169
    %187 = vmatprep.subr.bf16.mxu0 0
    %188 = vmatpush1.bf16.msra.mxu0 %v170
    %189 = vmatprep.subr.bf16.mxu0 0
    %190 = vmatpush1.bf16.msra.mxu0 %v171
    %191 = vmatprep.subr.bf16.mxu0 0
    %192 = vmatpush1.bf16.msra.mxu0 %v172
    %193 = vmatprep.subr.bf16.mxu0 0
    %194 = vmatpush1.bf16.msra.mxu0 %v173
    %195 = vmatprep.subr.bf16.mxu0 0
    %196 = vmatpush1.bf16.msra.mxu0 %v174
    %197 = vmatprep.subr.bf16.mxu0 0
    %198 = vmatpush1.bf16.msra.mxu0 %v175
    %199 = vmatprep.subr.bf16.mxu0 0
    %200 = vmatpush1.bf16.msra.mxu0 %v176
    %201 = vmatprep.subr.bf16.mxu0 0
    %202 = vmatpush1.bf16.msra.mxu0 0
    %203 = vmatprep.subr.bf16.mxu0 0
    %204 = vmatpush1.bf16.msra.mxu0 0
    %205 = vmatprep.subr.bf16.mxu0 0
    %206 = vmatpush1.bf16.msra.mxu0 0
    %207 = vmatprep.subr.bf16.mxu0 0
    %208 = vmatpush1.bf16.msra.mxu0 0
    %209 = vmatprep.subr.bf16.mxu0 0
    %210 = vmatpush1.bf16.msra.mxu0 0
    %211 = vmatprep.subr.bf16.mxu0 0
    %212 = vmatpush1.bf16.msra.mxu0 0
    %213 = vmatprep.subr.bf16.mxu0 0
    %214 = vmatpush1.bf16.msra.mxu0 0
    %215 = vmatprep.subr.bf16.mxu0 0
    %216 = vmatpush1.bf16.msra.mxu0 0
    %217 = vmatprep.mubr.bf16.mxu0 0
    %218 = vmatmul.mubr.bf16.gmra.mrb[0].mxu0 %v110
    %v219 = vpop.f32.mrb[0].mxu0
    %v220 = vadd.f32 %v135, %v219
    %v221 = vpop.f32.mrb[0].mxu0
    %v222 = vpop.f32.mrb[0].mxu0
    %v223 = vadd.f32 %v135, %v222
    %v224 = vpop.f32.mrb[0].mxu0
    %225 = vmatprep.mubr.bf16.mxu0 0
    %226 = vmatmul.mubr.bf16.gmra.mrb[0].mxu0 %v111
    %v227 = vpop.f32.mrb[0].mxu0
    %v228 = vadd.f32 %v135, %v227
    %v229 = vpop.f32.mrb[0].mxu0
    %v230 = vpop.f32.mrb[0].mxu0
    %v231 = vadd.f32 %v135, %v230
    %v232 = vpop.f32.mrb[0].mxu0
    %233 = vmatprep.mubr.bf16.mxu0 0
    %234 = vmatmul.mubr.bf16.gmra.mrb[0].mxu0 %v112
    %v235 = vpop.f32.mrb[0].mxu0
    %v236 = vadd.f32 %v135, %v235
    %v237 = vpop.f32.mrb[0].mxu0
    %v238 = vpop.f32.mrb[0].mxu0
    %v239 = vadd.f32 %v135, %v238
    %v240 = vpop.f32.mrb[0].mxu0
    %241 = vmatprep.mubr.bf16.mxu0 0
    %242 = vmatmul.mubr.bf16.gmra.mrb[0].mxu0 %v113
    %v243 = vpop.f32.mrb[0].mxu0
    %v244 = vadd.f32 %v135, %v243
    %v245 = vpop.f32.mrb[0].mxu0
    %v246 = vpop.f32.mrb[0].mxu0
    %v247 = vadd.f32 %v135, %v246
    %v248 = vpop.f32.mrb[0].mxu0
    %249 = vdwg.mxu0
    %v250 = vpack.c.bf16 %v223, %v220
    %v251 = vpack.c.bf16 %v231, %v228
    %v252 = vpack.c.bf16 %v239, %v236
    %v253 = vpack.c.bf16 %v247, %v244
    %v254 = vld [vmem:[#allocation7] sm:$0xf]
    %v255 = vld [vmem:[#allocation7 + $0x4] sm:$0xf]
    %v256 = vld [vmem:[#allocation7 + $0x8] sm:$0xf]
    %v257 = vld [vmem:[#allocation7 + $0xc] sm:$0xf]
    %v258 = vld [vmem:[#allocation7 + $0x10] sm:$0xf]
    %v259 = vld [vmem:[#allocation7 + $0x14] sm:$0xf]
    %v260 = vld [vmem:[#allocation7 + $0x18] sm:$0xf]
    %v261 = vld [vmem:[#allocation7 + $0x1c] sm:$0xf]
    %v262 = vld [vmem:[#allocation7 + $0x20] sm:$0xf]
    %v263 = vld [vmem:[#allocation7 + $0x24] sm:$0xf]
    %v264 = vld [vmem:[#allocation7 + $0x28] sm:$0xf]
    %v265 = vld [vmem:[#allocation7 + $0x2c] sm:$0xf]
    %v266 = vld [vmem:[#allocation7 + $0x30] sm:$0xf]
    %v267 = vld [vmem:[#allocation7 + $0x34] sm:$0xf]
    %v268 = vld [vmem:[#allocation7 + $0x38] sm:$0xf]
    %v269 = vld [vmem:[#allocation7 + $0x3c] sm:$0xf]
    %v270 = vld [vmem:[%s4] sm:$0x1]
    %v272 = vlaneseq
    %v273 = vshrl.u32 %v272, 7
    %v274 = vsub.s32 0, %v273
    %v275 = vrot.slane %v270, %v274
    %v293 = vunpack.c.l.b16 %v254
    %v294 = vunpack.c.l.b16 %v255
    %v295 = vunpack.c.l.b16 %v256
    %v296 = vunpack.c.l.b16 %v257
    %v297 = vunpack.c.l.b16 %v258
    %v298 = vunpack.c.l.b16 %v259
    %v299 = vunpack.c.l.b16 %v260
    %v300 = vunpack.c.l.b16 %v261
    %v301 = vunpack.c.l.b16 %v262
    %v302 = vunpack.c.l.b16 %v263
    %v303 = vunpack.c.l.b16 %v264
    %v304 = vunpack.c.l.b16 %v265
    %v305 = vunpack.c.l.b16 %v266
    %v306 = vunpack.c.l.b16 %v267
    %v307 = vunpack.c.l.b16 %v268
    %v308 = vunpack.c.l.b16 %v269
    %v309 = vpack.c.b16 %v294, %v293
    %v310 = vpack.c.b16 %v296, %v295
    %v311 = vpack.c.b16 %v298, %v297
    %v312 = vpack.c.b16 %v300, %v299
    %v313 = vpack.c.b16 %v302, %v301
    %v314 = vpack.c.b16 %v304, %v303
    %v315 = vpack.c.b16 %v306, %v305
    %v316 = vpack.c.b16 %v308, %v307
    %325 = vmatprep.subr.bf16.mxu0 0
    %326 = vmatpush1.bf16.msra.mxu0 %v309
    %327 = vmatprep.subr.bf16.mxu0 0
    %328 = vmatpush1.bf16.msra.mxu0 %v310
    %329 = vmatprep.subr.bf16.mxu0 0
    %330 = vmatpush1.bf16.msra.mxu0 %v311
    %331 = vmatprep.subr.bf16.mxu0 0
    %332 = vmatpush1.bf16.msra.mxu0 %v312
    %333 = vmatprep.subr.bf16.mxu0 0
    %334 = vmatpush1.bf16.msra.mxu0 %v313
    %335 = vmatprep.subr.bf16.mxu0 0
    %336 = vmatpush1.bf16.msra.mxu0 %v314
    %337 = vmatprep.subr.bf16.mxu0 0
    %338 = vmatpush1.bf16.msra.mxu0 %v315
    %339 = vmatprep.subr.bf16.mxu0 0
    %340 = vmatpush1.bf16.msra.mxu0 %v316
    %341 = vmatprep.subr.bf16.mxu0 0
    %342 = vmatpush1.bf16.msra.mxu0 0
    %343 = vmatprep.subr.bf16.mxu0 0
    %344 = vmatpush1.bf16.msra.mxu0 0
    %345 = vmatprep.subr.bf16.mxu0 0
    %346 = vmatpush1.bf16.msra.mxu0 0
    %347 = vmatprep.subr.bf16.mxu0 0
    %348 = vmatpush1.bf16.msra.mxu0 0
    %349 = vmatprep.subr.bf16.mxu0 0
    %350 = vmatpush1.bf16.msra.mxu0 0
    %351 = vmatprep.subr.bf16.mxu0 0
    %352 = vmatpush1.bf16.msra.mxu0 0
    %353 = vmatprep.subr.bf16.mxu0 0
    %354 = vmatpush1.bf16.msra.mxu0 0
    %355 = vmatprep.subr.bf16.mxu0 0
    %356 = vmatpush1.bf16.msra.mxu0 0
    %357 = vmatprep.mubr.bf16.mxu0 0
    %358 = vmatmul.mubr.bf16.gmra.mrb[0].mxu0 %v250
    %v359 = vpop.f32.mrb[0].mxu0
    %v360 = vadd.f32 %v275, %v359
    %v361 = vpop.f32.mrb[0].mxu0
    %v362 = vpop.f32.mrb[0].mxu0
    %v363 = vadd.f32 %v275, %v362
    %v364 = vpop.f32.mrb[0].mxu0
    %365 = vmatprep.mubr.bf16.mxu0 0
    %366 = vmatmul.mubr.bf16.gmra.mrb[0].mxu0 %v251
    %v367 = vpop.f32.mrb[0].mxu0
    %v368 = vadd.f32 %v275, %v367
    %v369 = vpop.f32.mrb[0].mxu0
    %v370 = vpop.f32.mrb[0].mxu0
    %v371 = vadd.f32 %v275, %v370
    %v372 = vpop.f32.mrb[0].mxu0
    %373 = vmatprep.mubr.bf16.mxu0 0
    %374 = vmatmul.mubr.bf16.gmra.mrb[0].mxu0 %v252
    %v375 = vpop.f32.mrb[0].mxu0
    %v376 = vadd.f32 %v275, %v375
    %v377 = vpop.f32.mrb[0].mxu0
    %v378 = vpop.f32.mrb[0].mxu0
    %v379 = vadd.f32 %v275, %v378
    %v380 = vpop.f32.mrb[0].mxu0
    %381 = vmatprep.mubr.bf16.mxu0 0
    %382 = vmatmul.mubr.bf16.gmra.mrb[0].mxu0 %v253
    %v383 = vpop.f32.mrb[0].mxu0
    %v384 = vadd.f32 %v275, %v383
    %v385 = vpop.f32.mrb[0].mxu0
    %v386 = vpop.f32.mrb[0].mxu0
    %v387 = vadd.f32 %v275, %v386
    %v388 = vpop.f32.mrb[0].mxu0
    %389 = vdwg.mxu0
    %v390 = vmax.f32 %v360, 0.0
    %v391 = vmax.f32 %v363, 0.0
    %v392 = vmax.f32 %v368, 0.0
    %v393 = vmax.f32 %v371, 0.0
    %v394 = vmax.f32 %v376, 0.0
    %v395 = vmax.f32 %v379, 0.0
    %v396 = vmax.f32 %v384, 0.0
    %v397 = vmax.f32 %v387, 0.0
    %v398 = vadd.f32 %v220, %v390
    %v399 = vadd.f32 %v223, %v391
    %v400 = vadd.f32 %v228, %v392
    %v401 = vadd.f32 %v231, %v393
    %v402 = vadd.f32 %v236, %v394
    %v403 = vadd.f32 %v239, %v395
    %v404 = vadd.f32 %v244, %v396
    %v405 = vadd.f32 %v247, %v397
    %v406 = vpack.c.bf16 %v399, %v398
    %v407 = vpack.c.bf16 %v401, %v400
    %v408 = vpack.c.bf16 %v403, %v402
    %v409 = vpack.c.bf16 %v405, %v404
    %v410 = vld [vmem:[#allocation8] sm:$0xf]
    %v411 = vld [vmem:[#allocation8 + $0x4] sm:$0xf]
    %v412 = vld [vmem:[#allocation8 + $0x8] sm:$0xf]
    %v413 = vld [vmem:[#allocation8 + $0xc] sm:$0xf]
    %v414 = vld [vmem:[#allocation8 + $0x10] sm:$0xf]
    %v415 = vld [vmem:[#allocation8 + $0x14] sm:$0xf]
    %v416 = vld [vmem:[#allocation8 + $0x18] sm:$0xf]
    %v417 = vld [vmem:[#allocation8 + $0x1c] sm:$0xf]
    %v418 = vld [vmem:[#allocation8 + $0x20] sm:$0xf]
    %v419 = vld [vmem:[#allocation8 + $0x24] sm:$0xf]
    %v420 = vld [vmem:[#allocation8 + $0x28] sm:$0xf]
    %v421 = vld [vmem:[#allocation8 + $0x2c] sm:$0xf]
    %v422 = vld [vmem:[#allocation8 + $0x30] sm:$0xf]
    %v423 = vld [vmem:[#allocation8 + $0x34] sm:$0xf]
    %v424 = vld [vmem:[#allocation8 + $0x38] sm:$0xf]
    %v425 = vld [vmem:[#allocation8 + $0x3c] sm:$0xf]
    %v426 = vld [vmem:[%s6] sm:$0x1]
    %v428 = vlaneseq
    %v429 = vshrl.u32 %v428, 7
    %v430 = vsub.s32 0, %v429
    %v431 = vrot.slane %v426, %v430
    %v449 = vunpack.c.l.b16 %v410
    %v450 = vunpack.c.l.b16 %v411
    %v451 = vunpack.c.l.b16 %v412
    %v452 = vunpack.c.l.b16 %v413
    %v453 = vunpack.c.l.b16 %v414
    %v454 = vunpack.c.l.b16 %v415
    %v455 = vunpack.c.l.b16 %v416
    %v456 = vunpack.c.l.b16 %v417
    %v457 = vunpack.c.l.b16 %v418
    %v458 = vunpack.c.l.b16 %v419
    %v459 = vunpack.c.l.b16 %v420
    %v460 = vunpack.c.l.b16 %v421
    %v461 = vunpack.c.l.b16 %v422
    %v462 = vunpack.c.l.b16 %v423
    %v463 = vunpack.c.l.b16 %v424
    %v464 = vunpack.c.l.b16 %v425
    %v465 = vpack.c.b16 %v450, %v449
    %v466 = vpack.c.b16 %v452, %v451
    %v467 = vpack.c.b16 %v454, %v453
    %v468 = vpack.c.b16 %v456, %v455
    %v469 = vpack.c.b16 %v458, %v457
    %v470 = vpack.c.b16 %v460, %v459
    %v471 = vpack.c.b16 %v462, %v461
    %v472 = vpack.c.b16 %v464, %v463
    %481 = vmatprep.subr.bf16.mxu0 0
    %482 = vmatpush1.bf16.msra.mxu0 %v465
    %483 = vmatprep.subr.bf16.mxu0 0
    %484 = vmatpush1.bf16.msra.mxu0 %v466
    %485 = vmatprep.subr.bf16.mxu0 0
    %486 = vmatpush1.bf16.msra.mxu0 %v467
    %487 = vmatprep.subr.bf16.mxu0 0
    %488 = vmatpush1.bf16.msra.mxu0 %v468
    %489 = vmatprep.subr.bf16.mxu0 0
    %490 = vmatpush1.bf16.msra.mxu0 %v469
    %491 = vmatprep.subr.bf16.mxu0 0
    %492 = vmatpush1.bf16.msra.mxu0 %v470
    %493 = vmatprep.subr.bf16.mxu0 0
    %494 = vmatpush1.bf16.msra.mxu0 %v471
    %495 = vmatprep.subr.bf16.mxu0 0
    %496 = vmatpush1.bf16.msra.mxu0 %v472
    %497 = vmatprep.subr.bf16.mxu0 0
    %498 = vmatpush1.bf16.msra.mxu0 0
    %499 = vmatprep.subr.bf16.mxu0 0
    %500 = vmatpush1.bf16.msra.mxu0 0
    %501 = vmatprep.subr.bf16.mxu0 0
    %502 = vmatpush1.bf16.msra.mxu0 0
    %503 = vmatprep.subr.bf16.mxu0 0
    %504 = vmatpush1.bf16.msra.mxu0 0
    %505 = vmatprep.subr.bf16.mxu0 0
    %506 = vmatpush1.bf16.msra.mxu0 0
    %507 = vmatprep.subr.bf16.mxu0 0
    %508 = vmatpush1.bf16.msra.mxu0 0
    %509 = vmatprep.subr.bf16.mxu0 0
    %510 = vmatpush1.bf16.msra.mxu0 0
    %511 = vmatprep.subr.bf16.mxu0 0
    %512 = vmatpush1.bf16.msra.mxu0 0
    %513 = vmatprep.mubr.bf16.mxu0 0
    %514 = vmatmul.mubr.bf16.gmra.mrb[0].mxu0 %v406
    %v515 = vpop.f32.mrb[0].mxu0
    %v516 = vadd.f32 %v431, %v515
    %v517 = vpop.f32.mrb[0].mxu0
    %v518 = vpop.f32.mrb[0].mxu0
    %v519 = vadd.f32 %v431, %v518
    %v520 = vpop.f32.mrb[0].mxu0
    %521 = vmatprep.mubr.bf16.mxu0 0
    %522 = vmatmul.mubr.bf16.gmra.mrb[0].mxu0 %v407
    %v523 = vpop.f32.mrb[0].mxu0
    %v524 = vadd.f32 %v431, %v523
    %v525 = vpop.f32.mrb[0].mxu0
    %v526 = vpop.f32.mrb[0].mxu0
    %v527 = vadd.f32 %v431, %v526
    %v528 = vpop.f32.mrb[0].mxu0
    %529 = vmatprep.mubr.bf16.mxu0 0
    %530 = vmatmul.mubr.bf16.gmra.mrb[0].mxu0 %v408
    %v531 = vpop.f32.mrb[0].mxu0
    %v532 = vadd.f32 %v431, %v531
    %v533 = vpop.f32.mrb[0].mxu0
    %v534 = vpop.f32.mrb[0].mxu0
    %v535 = vadd.f32 %v431, %v534
    %v536 = vpop.f32.mrb[0].mxu0
    %537 = vmatprep.mubr.bf16.mxu0 0
    %538 = vmatmul.mubr.bf16.gmra.mrb[0].mxu0 %v409
    %v539 = vpop.f32.mrb[0].mxu0
    %v540 = vadd.f32 %v431, %v539
    %v541 = vpop.f32.mrb[0].mxu0
    %v542 = vpop.f32.mrb[0].mxu0
    %v543 = vadd.f32 %v431, %v542
    %v544 = vpop.f32.mrb[0].mxu0
    %545 = vdwg.mxu0
    %v546 = vmax.f32 %v516, 0.0
    %v547 = vmax.f32 %v519, 0.0
    %v548 = vmax.f32 %v524, 0.0
    %v549 = vmax.f32 %v527, 0.0
    %v550 = vmax.f32 %v532, 0.0
    %v551 = vmax.f32 %v535, 0.0
    %v552 = vmax.f32 %v540, 0.0
    %v553 = vmax.f32 %v543, 0.0
    %v554 = vadd.f32 %v398, %v546
    %v555 = vadd.f32 %v399, %v547
    %v556 = vadd.f32 %v400, %v548
    %v557 = vadd.f32 %v401, %v549
    %v558 = vadd.f32 %v402, %v550
    %v559 = vadd.f32 %v403, %v551
    %v560 = vadd.f32 %v404, %v552
    %v561 = vadd.f32 %v405, %v553
    %v562 = vrot.slane %v554, 4
    %v563 = vadd.f32 %v554, %v562
    %v564 = vrot.slane %v563, 2
    %v565 = vadd.f32 %v563, %v564
    %v566 = vrot.slane %v565, 1
    %v567 = vadd.f32 %v565, %v566
    %v568 = vrot.slane %v555, 4
    %v569 = vadd.f32 %v555, %v568
    %v570 = vrot.slane %v569, 2
    %v571 = vadd.f32 %v569, %v570
    %v572 = vrot.slane %v571, 1
    %v573 = vadd.f32 %v571, %v572
    %v574 = vrot.slane %v556, 4
    %v575 = vadd.f32 %v556, %v574
    %v576 = vrot.slane %v575, 2
    %v577 = vadd.f32 %v575, %v576
    %v578 = vrot.slane %v577, 1
    %v579 = vadd.f32 %v577, %v578
    %v580 = vrot.slane %v557, 4
    %v581 = vadd.f32 %v557, %v580
    %v582 = vrot.slane %v581, 2
    %v583 = vadd.f32 %v581, %v582
    %v584 = vrot.slane %v583, 1
    %v585 = vadd.f32 %v583, %v584
    %v586 = vrot.slane %v558, 4
    %v587 = vadd.f32 %v558, %v586
    %v588 = vrot.slane %v587, 2
    %v589 = vadd.f32 %v587, %v588
    %v590 = vrot.slane %v589, 1
    %v591 = vadd.f32 %v589, %v590
    %v592 = vrot.slane %v559, 4
    %v593 = vadd.f32 %v559, %v592
    %v594 = vrot.slane %v593, 2
    %v595 = vadd.f32 %v593, %v594
    %v596 = vrot.slane %v595, 1
    %v597 = vadd.f32 %v595, %v596
    %v598 = vrot.slane %v560, 4
    %v599 = vadd.f32 %v560, %v598
    %v600 = vrot.slane %v599, 2
    %v601 = vadd.f32 %v599, %v600
    %v602 = vrot.slane %v601, 1
    %v603 = vadd.f32 %v601, %v602
    %v604 = vrot.slane %v561, 4
    %v605 = vadd.f32 %v561, %v604
    %v606 = vrot.slane %v605, 2
    %v607 = vadd.f32 %v605, %v606
    %v608 = vrot.slane %v607, 1
    %v609 = vadd.f32 %v607, %v608
    %v610 = vpack.c.bf16 %v567, %v567
    %v611 = vpack.c.bf16 %v573, %v573
    %v612 = vpack.c.bf16 %v579, %v579
    %v613 = vpack.c.bf16 %v585, %v585
    %v614 = vpack.c.bf16 %v591, %v591
    %v615 = vpack.c.bf16 %v597, %v597
    %v616 = vpack.c.bf16 %v603, %v603
    %v617 = vpack.c.bf16 %v609, %v609
    %v618 = vld [vmem:[#allocation10] sm:$0xf]
    %v619 = vld [vmem:[#allocation10 + $0x4] sm:$0xf]
    %v620 = vld [vmem:[#allocation10 + $0x8] sm:$0xf]
    %v621 = vld [vmem:[#allocation10 + $0xc] sm:$0xf]
    %v622 = vld [vmem:[#allocation10 + $0x10] sm:$0xf]
    %v623 = vld [vmem:[#allocation10 + $0x14] sm:$0xf]
    %v624 = vld [vmem:[#allocation10 + $0x18] sm:$0xf]
    %v625 = vld [vmem:[#allocation10 + $0x1c] sm:$0xf]
    %v626 = vld [vmem:[#allocation10 + $0x20] sm:$0xf]
    %v627 = vld [vmem:[#allocation10 + $0x24] sm:$0xf]
    %v628 = vld [vmem:[#allocation10 + $0x28] sm:$0xf]
    %v629 = vld [vmem:[#allocation10 + $0x2c] sm:$0xf]
    %v630 = vld [vmem:[#allocation10 + $0x30] sm:$0xf]
    %v631 = vld [vmem:[#allocation10 + $0x34] sm:$0xf]
    %v632 = vld [vmem:[#allocation10 + $0x38] sm:$0xf]
    %v633 = vld [vmem:[#allocation10 + $0x3c] sm:$0xf]
    %v634 = vld [vmem:[%s8] sm:$0x1]
    %v635 = vmul.f32 %v634, 8.0
    %v637 = vlaneseq
    %v638 = vshrl.u32 %v637, 7
    %v639 = vsub.s32 0, %v638
    %v640 = vrot.slane %v635, %v639
    %v650 = vunpack.c.l.b16 %v610
    %v651 = vunpack.c.l.b16 %v611
    %v652 = vunpack.c.l.b16 %v612
    %v653 = vunpack.c.l.b16 %v613
    %v654 = vunpack.c.l.b16 %v614
    %v655 = vunpack.c.l.b16 %v615
    %v656 = vunpack.c.l.b16 %v616
    %v657 = vunpack.c.l.b16 %v617
    %vm658 = vcmask 1041409
    %v659 = vsel %vm658, %v651, %v650
    %vm660 = vcmask 1042434
    %v661 = vsel %vm660, %v652, %v659
    %vm662 = vcmask 1043459
    %v663 = vsel %vm662, %v653, %v661
    %vm664 = vcmask 1044484
    %v665 = vsel %vm664, %v654, %v663
    %vm666 = vcmask 1045509
    %v667 = vsel %vm666, %v655, %v665
    %vm668 = vcmask 1046534
    %v669 = vsel %vm668, %v656, %v667
    %vm670 = vcmask 1047559
    %v671 = vsel %vm670, %v657, %v669
    %v672 = vpack.c.b16 %v671, %v671
    %v690 = vunpack.c.l.b16 %v618
    %v691 = vunpack.c.l.b16 %v619
    %v692 = vunpack.c.l.b16 %v620
    %v693 = vunpack.c.l.b16 %v621
    %v694 = vunpack.c.l.b16 %v622
    %v695 = vunpack.c.l.b16 %v623
    %v696 = vunpack.c.l.b16 %v624
    %v697 = vunpack.c.l.b16 %v625
    %v698 = vunpack.c.l.b16 %v626
    %v699 = vunpack.c.l.b16 %v627
    %v700 = vunpack.c.l.b16 %v628
    %v701 = vunpack.c.l.b16 %v629
    %v702 = vunpack.c.l.b16 %v630
    %v703 = vunpack.c.l.b16 %v631
    %v704 = vunpack.c.l.b16 %v632
    %v705 = vunpack.c.l.b16 %v633
    %v706 = vpack.c.b16 %v691, %v690
    %v707 = vpack.c.b16 %v693, %v692
    %v708 = vpack.c.b16 %v695, %v694
    %v709 = vpack.c.b16 %v697, %v696
    %v710 = vpack.c.b16 %v699, %v698
    %v711 = vpack.c.b16 %v701, %v700
    %v712 = vpack.c.b16 %v703, %v702
    %v713 = vpack.c.b16 %v705, %v704
    %722 = vmatprep.subr.bf16.mxu0 0
    %723 = vmatpush1.bf16.msra.mxu0 %v706
    %724 = vmatprep.subr.bf16.mxu0 0
    %725 = vmatpush1.bf16.msra.mxu0 %v707
    %726 = vmatprep.subr.bf16.mxu0 0
    %727 = vmatpush1.bf16.msra.mxu0 %v708
    %728 = vmatprep.subr.bf16.mxu0 0
    %729 = vmatpush1.bf16.msra.mxu0 %v709
    %730 = vmatprep.subr.bf16.mxu0 0
    %731 = vmatpush1.bf16.msra.mxu0 %v710
    %732 = vmatprep.subr.bf16.mxu0 0
    %733 = vmatpush1.bf16.msra.mxu0 %v711
    %734 = vmatprep.subr.bf16.mxu0 0
    %735 = vmatpush1.bf16.msra.mxu0 %v712
    %736 = vmatprep.subr.bf16.mxu0 0
    %737 = vmatpush1.bf16.msra.mxu0 %v713
    %738 = vmatprep.subr.bf16.mxu0 0
    %739 = vmatpush1.bf16.msra.mxu0 0
    %740 = vmatprep.subr.bf16.mxu0 0
    %741 = vmatpush1.bf16.msra.mxu0 0
    %742 = vmatprep.subr.bf16.mxu0 0
    %743 = vmatpush1.bf16.msra.mxu0 0
    %744 = vmatprep.subr.bf16.mxu0 0
    %745 = vmatpush1.bf16.msra.mxu0 0
    %746 = vmatprep.subr.bf16.mxu0 0
    %747 = vmatpush1.bf16.msra.mxu0 0
    %748 = vmatprep.subr.bf16.mxu0 0
    %749 = vmatpush1.bf16.msra.mxu0 0
    %750 = vmatprep.subr.bf16.mxu0 0
    %751 = vmatpush1.bf16.msra.mxu0 0
    %752 = vmatprep.subr.bf16.mxu0 0
    %753 = vmatpush1.bf16.msra.mxu0 0
    %754 = vmatprep.mubr.bf16.mxu0 0
    %755 = vmatmul.mubr.bf16.gmra.mrb[0].mxu0 %v672
    %v756 = vpop.f32.mrb[0].mxu0
    %v757 = vadd.f32 %v640, %v756
    %v758 = vpop.f32.mrb[0].mxu0
    %v759 = vpop.f32.mrb[0].mxu0
    %v760 = vpop.f32.mrb[0].mxu0
    %761 = vdwg.mxu0
    %762 = vst [vmem:[#allocation11] sm:$0xff] %v757
    // Predicated region
    $region58: #{tpu_custom_call.1} parent=1 // pred_check
      _
    $region59: #{tpu_custom_call.1} parent=1 // pred_check_branch
      %764 = sbr.rel (0) target = $region61
    $region60: #{tpu_custom_call.1} parent=1 // pred_region
      %s766 = ssub.s32 128, 128
      %767 = vsyncadd [#allocation4], %s766
      %s769 = sshll.u32 [#allocation11], 4
      %s770 = int_to_ptr.vmem [resolvable:$true] %s769
      %772 = dma.vmem_to_hbm [thread:$0]  %s770, 128, %s9, [#allocation4]
    $region61: #{tpu_custom_call.1} parent=1 // pred_fallthru
      _
    // Predicated region
    $region62: #{tpu_custom_call.1} parent=1 // pred_check
      _
    $region63: #{tpu_custom_call.1} parent=1 // pred_check_branch
      %774 = sbr.rel (0) target = $region65
    $region64: #{tpu_custom_call.1} parent=1 // pred_region
      %775 = dma.done [#allocation4], 128
    $region65: #{tpu_custom_call.1} parent=1 // pred_fallthru
      _
    %776 = vsyncpa [#allocation3], 1
    %777 = vsyncpa [#allocation6], 1
    %778 = vsyncpa [#allocation9], 1
    %779 = vsyncpa [#allocation4], 1

</llo_original>
